<compile_context>
chip_gen: v7x
topology: tpu7x:2x2x1
jax: 0.10.0
libtpu: 0.0.40
codegen_flags: <defaults>
</compile_context>

<pallas_src>
import functools

import jax
import jax.numpy as jnp
from jax import lax
from jax.experimental import pallas as pl
from jax.experimental.pallas import tpu as pltpu


def _adain_kernel(x_ref, gb_ref, o_ref, *, eps: float, fused_stats: bool):
    # x_ref: (block_n, L)   one spatial row per (batch, channel) instance
    # gb_ref: (block_n, 2)  column 0 = gamma, column 1 = beta
    x = x_ref[...].astype(jnp.float32)
    l = x.shape[-1]
    inv_l = jnp.float32(1.0 / l)

    if fused_stats:
        # Single sweep over the tile (v7x: one fewer VMEM re-read, fewer VPU
        # ops); var = E[x^2] - mean^2, clamped against cancellation underflow.
        s1 = jnp.sum(x, axis=-1, keepdims=True)
        s2 = jnp.sum(x * x, axis=-1, keepdims=True)
        mean = s1 * inv_l
        var = jnp.maximum(s2 * inv_l - mean * mean, 0.0)
    else:
        # Two-pass centered variance (better cancellation behaviour; plenty of
        # VPU headroom on v5e/v6e).
        mean = jnp.sum(x, axis=-1, keepdims=True) * inv_l
        xc = x - mean
        var = jnp.sum(xc * xc, axis=-1, keepdims=True) * inv_l

    inv = lax.rsqrt(var + eps)                       # EUP slot (free-ish)
    gb = gb_ref[...].astype(jnp.float32)
    scale = inv * gb[:, 0:1]                         # per-row scalars
    shift = gb[:, 1:2] - mean * scale
    o_ref[...] = (x * scale + shift).astype(o_ref.dtype)


def _tpu_config():
    """Per-generation tile / VMEM policy."""
    kind = ""
    try:
        kind = jax.devices()[0].device_kind.lower()
    except Exception:
        pass
    if "v7" in kind:
        # 64 MiB VMEM per TC, 2 TCs share the "parallel" grid axis: smaller
        # tiles, even step count, fused single-pass stats (3.2 TB/s HBM makes
        # VALU/vld closer to binding).
        return dict(target_bytes=3 << 20, max_live_bytes=20 << 20,
                    vmem_limit=48 << 20, min_steps=4, even_steps=True,
                    fused_stats=True)
    # v5e / v6e: 128 MiB VMEM, single TC.  Bigger tiles approach the HBM
    # roofline; the explicit vmem_limit_bytes is mandatory on v5e (16 MiB
    # default scoped limit).
    return dict(target_bytes=6 << 20, max_live_bytes=28 << 20,
                vmem_limit=64 << 20, min_steps=3, even_steps=False,
                fused_stats=False)


def _pick_block_n(n, l, itemsize, cfg):
    """Rows per block from a VMEM byte budget, aligned to sublane packing."""
    if itemsize >= 4:
        align = 8
    elif itemsize == 2:
        align = 16
    else:
        align = 32
    if n <= align:
        return n                                    # full-dim block is always legal

    in_row = l * itemsize
    # Live VMEM per row: double-buffered input + output tiles plus ~2 f32
    # working copies inside the kernel (matters for bf16/int8 inputs).
    live_row = 4 * in_row + 2 * l * 4

    bn = max(align, (cfg["target_bytes"] // max(1, in_row)) // align * align)
    while bn > align and bn * live_row > cfg["max_live_bytes"]:
        bn -= align
    bn = min(bn, pl.cdiv(n, align) * align)

    # Keep enough grid steps for DMA/compute overlap (and both v7x TCs busy).
    if pl.cdiv(n, bn) < cfg["min_steps"]:
        bn = max(align, (n // cfg["min_steps"]) // align * align)

    # Prefer an even step count on dual-TC parts so the work splits evenly.
    if cfg["even_steps"]:
        while bn > align and pl.cdiv(n, bn) % 2 == 1:
            bn -= align
    return bn


def adaptive_instance_norm_2d(x, weight, bias, *, eps=1e-5):
    """x: (b, c, h, w) NCHW.  weight/bias: (c,) or (b*c,).  Returns (b, c, h, w)."""
    b, c, h, w = x.shape
    n = b * c
    l = h * w
    itemsize = jnp.dtype(x.dtype).itemsize

    x2d = x.reshape(n, l)

    # F.batch_norm on the (1, b*c, h, w) view indexes the affine per b*c
    # channel.  Accept (b*c,)-shaped params (MUNIT-style per-sample styles)
    # directly, or tile (c,)-shaped params across the batch.
    w_f = weight.astype(jnp.float32).reshape(-1)
    b_f = bias.astype(jnp.float32).reshape(-1)
    if w_f.shape[0] != n:
        w_f = jnp.tile(w_f, b)
        b_f = jnp.tile(b_f, b)
    gb = jnp.stack([w_f, b_f], axis=-1)              # (n, 2): one side DMA per step

    cfg = _tpu_config()
    block_n = _pick_block_n(n, l, itemsize, cfg)
    grid = (pl.cdiv(n, block_n),)

    out2d = pl.pallas_call(
        functools.partial(_adain_kernel, eps=float(eps),
                          fused_stats=cfg["fused_stats"]),
        out_shape=jax.ShapeDtypeStruct((n, l), x.dtype),
        grid=grid,
        in_specs=[
            pl.BlockSpec((block_n, l), lambda i: (i, 0)),
            pl.BlockSpec((block_n, 2), lambda i: (i, 0)),
        ],
        out_specs=pl.BlockSpec((block_n, l), lambda i: (i, 0)),
        compiler_params=pltpu.CompilerParams(
            dimension_semantics=("parallel",),
            vmem_limit_bytes=cfg["vmem_limit"],
        ),
        cost_estimate=pl.CostEstimate(
            flops=7 * n * l,
            transcendentals=n,
            bytes_accessed=2 * n * l * itemsize + 8 * n,
        ),
    )(x2d, gb)

    return out2d.reshape(b, c, h, w)


def _reference(x, weight, bias, eps=1e-5):
    b, c, h, w = x.shape
    n = b * c
    xr = x.reshape(n, h * w).astype(jnp.float32)
    mean = xr.mean(axis=-1, keepdims=True)
    var = ((xr - mean) ** 2).mean(axis=-1, keepdims=True)
    g = weight.astype(jnp.float32).reshape(-1)
    bb = bias.astype(jnp.float32).reshape(-1)
    if g.shape[0] != n:
        g = jnp.tile(g, b)
        bb = jnp.tile(bb, b)
    y = (xr - mean) / jnp.sqrt(var + eps) * g.reshape(n, 1) + bb.reshape(n, 1)
    return y.reshape(b, c, h, w).astype(x.dtype)


if __name__ == "__main__":
    key = jax.random.PRNGKey(0)
    k_x, k_w, k_b, k_x2 = jax.random.split(key, 4)

    # Case 1: spatial size a multiple of 128 (16*16 = 256).
    b, c, h, w = 2, 4, 16, 16
    x = jax.random.normal(k_x, (b, c, h, w), dtype=jnp.float32)
    weight = 1.0 + 0.1 * jax.random.normal(k_w, (c,), dtype=jnp.float32)
    bias = 0.1 * jax.random.normal(k_b, (c,), dtype=jnp.float32)

    out = adaptive_instance_norm_2d(x, weight, bias, eps=1e-5)
    out = jax.block_until_ready(out)
    ref = _reference(x, weight, bias, eps=1e-5)
    assert out.shape == (b, c, h, w)
    assert jnp.allclose(out, ref, atol=1e-4, rtol=1e-4)

    # Case 2: spatial size NOT a multiple of 128 (12*12 = 144) — exercises the
    # no-pad path where the block's last dim equals the full array dim.
    b2, c2, h2, w2 = 2, 4, 12, 12
    x2 = jax.random.normal(k_x2, (b2, c2, h2, w2), dtype=jnp.float32)
    out2 = adaptive_instance_norm_2d(x2, weight, bias, eps=1e-5)
    out2 = jax.block_until_ready(out2)
    ref2 = _reference(x2, weight, bias, eps=1e-5)
    assert out2.shape == (b2, c2, h2, w2)
    assert jnp.allclose(out2, ref2, atol=1e-4, rtol=1e-4)

    print("KERNEL_OK")
</pallas_src>

<mosaic_0001>
module attributes {stable_mosaic.version = 11 : i64} {
  func.func @_adain_kernel(%arg0: i32, %arg1: memref<8x256xf32, #tpu.memory_space<vmem>>, %arg2: memref<8x2xf32, #tpu.memory_space<vmem>>, %arg3: memref<8x256xf32, #tpu.memory_space<vmem>>) attributes {dimension_semantics = [#tpu.dimension_semantics<parallel>], iteration_bounds = array<i64: 1>, scalar_prefetch = 0 : i64, scratch_operands = 0 : i64, tpu.core_type = #tpu.core_type<tc>, window_params = [{transform_indices = @transform_0, window_bounds = array<i64: 8, 256>}, {transform_indices = @transform_1, window_bounds = array<i64: 8, 2>}, {transform_indices = @transform_2, window_bounds = array<i64: 8, 256>}]} {
    %c0 = arith.constant 0 : index
    %c0_0 = arith.constant 0 : index
    %0 = vector.load %arg1[%c0, %c0_0] : memref<8x256xf32, #tpu.memory_space<vmem>>, vector<8x256xf32>
    %cst = arith.constant dense<0.000000e+00> : vector<8xf32>
    %1 = vector.multi_reduction <add>, %0, %cst [1] : vector<8x256xf32> to vector<8xf32>
    %2 = vector.shape_cast %1 : vector<8xf32> to vector<8x1xf32>
    %cst_1 = arith.constant 3.906250e-03 : f32
    %3 = vector.broadcast %cst_1 : f32 to vector<8x1xf32>
    %4 = arith.mulf %2, %3 : vector<8x1xf32>
    %5 = vector.broadcast %4 : vector<8x1xf32> to vector<8x256xf32>
    %6 = arith.subf %0, %5 : vector<8x256xf32>
    %7 = arith.mulf %6, %6 : vector<8x256xf32>
    %cst_2 = arith.constant dense<0.000000e+00> : vector<8xf32>
    %8 = vector.multi_reduction <add>, %7, %cst_2 [1] : vector<8x256xf32> to vector<8xf32>
    %9 = vector.shape_cast %8 : vector<8xf32> to vector<8x1xf32>
    %cst_3 = arith.constant 3.906250e-03 : f32
    %10 = vector.broadcast %cst_3 : f32 to vector<8x1xf32>
    %11 = arith.mulf %9, %10 : vector<8x1xf32>
    %cst_4 = arith.constant 9.99999974E-6 : f32
    %12 = vector.broadcast %cst_4 : f32 to vector<8x1xf32>
    %13 = arith.addf %11, %12 : vector<8x1xf32>
    %14 = math.rsqrt %13 : vector<8x1xf32>
    %c0_5 = arith.constant 0 : index
    %c0_6 = arith.constant 0 : index
    %15 = vector.load %arg2[%c0_5, %c0_6] : memref<8x2xf32, #tpu.memory_space<vmem>>, vector<8x2xf32>
    %16 = vector.extract_strided_slice %15 {offsets = [0, 0], sizes = [8, 1], strides = [1, 1]} : vector<8x2xf32> to vector<8x1xf32>
    %17 = arith.mulf %14, %16 : vector<8x1xf32>
    %18 = vector.extract_strided_slice %15 {offsets = [0, 1], sizes = [8, 1], strides = [1, 1]} : vector<8x2xf32> to vector<8x1xf32>
    %19 = arith.mulf %4, %17 : vector<8x1xf32>
    %20 = arith.subf %18, %19 : vector<8x1xf32>
    %21 = vector.broadcast %17 : vector<8x1xf32> to vector<8x256xf32>
    %22 = arith.mulf %0, %21 : vector<8x256xf32>
    %23 = vector.broadcast %20 : vector<8x1xf32> to vector<8x256xf32>
    %24 = arith.addf %22, %23 : vector<8x256xf32>
    %c0_7 = arith.constant 0 : index
    %c0_8 = arith.constant 0 : index
    %25 = vector.load %arg3[%c0_7, %c0_8] : memref<8x256xf32, #tpu.memory_space<vmem>>, vector<8x256xf32>
    tpu.vector_store %arg3[%c0_7, %c0_8], %24 {strides = array<i32>} : memref<8x256xf32, #tpu.memory_space<vmem>>, vector<8x256xf32>,
    return
  }
  func.func @transform_0(%arg0: i32) -> (i32, i32) {
    %c0_i32 = arith.constant 0 : i32
    %c0_i32_0 = arith.constant 0 : i32
    return %arg0, %c0_i32 : i32, i32
  }
  func.func @transform_1(%arg0: i32) -> (i32, i32) {
    %c0_i32 = arith.constant 0 : i32
    %c0_i32_0 = arith.constant 0 : i32
    return %arg0, %c0_i32 : i32, i32
  }
  func.func @transform_2(%arg0: i32) -> (i32, i32) {
    %c0_i32 = arith.constant 0 : i32
    %c0_i32_0 = arith.constant 0 : i32
    return %arg0, %c0_i32 : i32, i32
  }
}

</mosaic_0001>

<llo_original>
// kernel: tpu_custom_call.1
$region0: #{tpu_custom_call.1}
  #allocation0 [shape = 'u32[]', space=smem, size = 0x4, offset = 0x4, fixed_abs, tag = 'smem constant byte address 0x4 - core index']
  #allocation1 [shape = 'u32[144,128]{1,0:T(1,128)}', space=vmem, size = 0x12000, scoped, tag = 'internal scratch']
  %s0 = inlined_call_operand.hbm [shape: f32[8,256], index: 0, kind: input, shape index: {}]
  %s1 = inlined_call_operand.hbm [shape: f32[8,2], index: 1, kind: input, shape index: {}]
  %s2 = inlined_call_operand.hbm [shape: f32[8,256], index: 2, kind: output, shape index: {}]
  %s3 = sld [smem:[#allocation0]]
  $region26: #{tpu_custom_call.1} parent=0
    _
  %s5 = ssub.s32 1, %s3
  %s6 = scalar_select 0, %s5, %s3
  $region1: #{tpu_custom_call.1} parent=0
    #allocation2 [shape = 'u8[8192]{0}', space=vmem, size = 0x2000, scoped, tag = 'input window, operand 0, single buffered']
    #allocation3 [shape = 's32[1]{0}', space=sflag, size = 0x4, scoped, tag = 'scoped memory for tpu_custom_call.1']
    #allocation4 [shape = 's32[1]{0}', space=sflag, size = 0x4, scoped, tag = 'scoped memory for tpu_custom_call.1']
    #allocation5 [shape = 'u8[4096]{0}', space=vmem, size = 0x1000, scoped, tag = 'input window, operand 1, single buffered']
    #allocation6 [shape = 's32[1]{0}', space=sflag, size = 0x4, scoped, tag = 'scoped memory for tpu_custom_call.1']
    #allocation7 [shape = 'u8[8192]{0}', space=vmem, size = 0x2000, scoped, tag = 'output window, operand 0, single buffered']
    %7 = vsyncpa [#allocation3], 0
    %8 = vsyncpa [#allocation6], 0
    %9 = vsyncpa [#allocation4], 0
    // Predicated region
    $region2: #{tpu_custom_call.1} parent=1 // pred_check
      _
    $region3: #{tpu_custom_call.1} parent=1 // pred_check_branch
      %11 = sbr.rel (0) target = $region5
    $region4: #{tpu_custom_call.1} parent=1 // pred_region
      %s13 = ssub.s32 256, 256
      %14 = vsyncadd [#allocation3], %s13
      %s16 = sshll.u32 [#allocation2], 4
      %s17 = int_to_ptr.vmem [resolvable:$true] %s16
      %19 = dma.hbm_to_vmem [thread:$0]  %s0, 256, %s17, [#allocation3]
    $region5: #{tpu_custom_call.1} parent=1 // pred_fallthru
      _
    // Predicated region
    $region6: #{tpu_custom_call.1} parent=1 // pred_check
      _
    $region7: #{tpu_custom_call.1} parent=1 // pred_check_branch
      %21 = sbr.rel (0) target = $region9
    $region8: #{tpu_custom_call.1} parent=1 // pred_region
      %s23 = ssub.s32 128, 128
      %24 = vsyncadd [#allocation6], %s23
      %s26 = sshll.u32 [#allocation5], 4
      %s27 = int_to_ptr.vmem [resolvable:$true] %s26
      %29 = dma.hbm_to_vmem [thread:$0]  %s1, 128, %s27, [#allocation6]
    $region9: #{tpu_custom_call.1} parent=1 // pred_fallthru
      _
    // Predicated region
    $region10: #{tpu_custom_call.1} parent=1 // pred_check
      _
    $region11: #{tpu_custom_call.1} parent=1 // pred_check_branch
      %31 = sbr.rel (0) target = $region13
    $region12: #{tpu_custom_call.1} parent=1 // pred_region
      %32 = dma.done [#allocation3], 256
    $region13: #{tpu_custom_call.1} parent=1 // pred_fallthru
      _
    // Predicated region
    $region14: #{tpu_custom_call.1} parent=1 // pred_check
      _
    $region15: #{tpu_custom_call.1} parent=1 // pred_check_branch
      %34 = sbr.rel (0) target = $region17
    $region16: #{tpu_custom_call.1} parent=1 // pred_region
      %35 = dma.done [#allocation6], 128
    $region17: #{tpu_custom_call.1} parent=1 // pred_fallthru
      _
    %v36 = vld [vmem:[#allocation2] sm:$0xff]
    %v37 = vld [vmem:[#allocation2 + $0x8] sm:$0xff]
    %v38 = vadd.f32 %v36, %v37
    %39 = vadd.xlane.f32.xlu0 %v38
    %v40 = vpop.xlane.xlu0 %39
    %v41 = vmul.f32 %v40, 0.00390625
    %v42 = vsub.f32 %v36, %v41
    %v43 = vsub.f32 %v37, %v41
    %v44 = vmul.f32 %v42, %v42
    %v45 = vmul.f32 %v43, %v43
    %v46 = vadd.f32 %v44, %v45
    %47 = vadd.xlane.f32.xlu0 %v46
    %v48 = vpop.xlane.xlu0 %47
    %v49 = vmul.f32 %v48, 0.00390625
    %v50 = vadd.f32 %v49, 1e-05
    %v51 = vrsqrt.pop %v50
    %v52 = vld [vmem:[#allocation5] sm:$0xff]
    %v53 = vmul.f32 %v51, %v52
    %v54 = vmul.f32 %v41, %v53
    %56 = vrot.lane.b32.xlu0 %v54, 1
    %v57 = vpop.permute.xlu0 %56
    %v59 = vsub.f32 %v52, %v57
    %61 = vset.pattern.permute.xlu0 0
    %62 = vperm.xlu0 %61, %v53
    %v63 = vpop.permute.xlu0 %62
    %v65 = vmul.f32 %v36, %v63
    %v66 = vmul.f32 %v37, %v63
    %68 = vset.pattern.permute.xlu0 1
    %69 = vperm.xlu0 %68, %v59
    %v70 = vpop.permute.xlu0 %69
    %v72 = vadd.f32 %v65, %v70
    %v73 = vadd.f32 %v66, %v70
    %74 = vst [vmem:[#allocation7] sm:$0xff] %v72
    %75 = vst [vmem:[#allocation7 + $0x8] sm:$0xff] %v73
    // Predicated region
    $region18: #{tpu_custom_call.1} parent=1 // pred_check
      _
    $region19: #{tpu_custom_call.1} parent=1 // pred_check_branch
      %77 = sbr.rel (0) target = $region21
    $region20: #{tpu_custom_call.1} parent=1 // pred_region
      %s79 = ssub.s32 256, 256
      %80 = vsyncadd [#allocation4], %s79
      %s82 = sshll.u32 [#allocation7], 4
      %s83 = int_to_ptr.vmem [resolvable:$true] %s82
      %85 = dma.vmem_to_hbm [thread:$0]  %s83, 256, %s2, [#allocation4]
    $region21: #{tpu_custom_call.1} parent=1 // pred_fallthru
      _
    // Predicated region
    $region22: #{tpu_custom_call.1} parent=1 // pred_check
      _
    $region23: #{tpu_custom_call.1} parent=1 // pred_check_branch
      %87 = sbr.rel (0) target = $region25
    $region24: #{tpu_custom_call.1} parent=1 // pred_region
      %88 = dma.done [#allocation4], 256
    $region25: #{tpu_custom_call.1} parent=1 // pred_fallthru
      _
    %89 = vsyncpa [#allocation3], 1
    %90 = vsyncpa [#allocation6], 1
    %91 = vsyncpa [#allocation4], 1

</llo_original>
